<compile_context>
chip_gen: v5e
topology: v5e:2x2
jax: 0.10.0
libtpu: 0.0.40
codegen_flags: <defaults>
</compile_context>

<pallas_src>
import math

import jax
import jax.numpy as jnp
from jax.experimental import pallas as pl
from jax.experimental.pallas import tpu as pltpu


# ----------------------------------------------------------------------------
# Pallas kernel:  out_tile = (patches_tile f32 -> bf16) @ W(bf16) + bias
# ----------------------------------------------------------------------------
def _make_patch_embed_kernel(tm, n_bias_rows, sliced_bias):
    """Build the kernel closure.

    sliced_bias=False: b_ref is a (TM, D) block (bias pre-tiled at trace time),
                       constant index_map -> VMEM resident, read whole.
    sliced_bias=True : b_ref is the full (N, D) bias, constant index_map ->
                       VMEM resident; the (TM, D) slab for this tile is sliced
                       in-kernel, so no bias bytes are re-streamed from HBM.
    """
    def kernel(p_ref, w_ref, b_ref, o_ref):
        if sliced_bias:
            start = pl.multiple_of((pl.program_id(0) * tm) % n_bias_rows, 8)
            bias = b_ref[pl.ds(start, tm), :]
        else:
            bias = b_ref[...]
        acc = jnp.dot(p_ref[...].astype(jnp.bfloat16), w_ref[...],
                      preferred_element_type=jnp.float32)
        o_ref[...] = (acc + bias).astype(o_ref.dtype)

    return kernel


def _vmem_limit_bytes():
    # Size against the current generation's physical VMEM (64 MiB/TC on v7x,
    # 128 MiB on v5e/v6e) leaving headroom for double buffering.
    try:
        cap = getattr(pltpu.get_tpu_info(), "vmem_capacity_bytes", 128 * 1024 * 1024)
    except Exception:
        cap = 64 * 1024 * 1024
    return int(min(int(cap * 0.75), 96 * 1024 * 1024))


def _divisors(n):
    return [d for d in range(1, n + 1) if n % d == 0]


def _plan_tiles(M, N, target_rows=1024, min_steps=4):
    """Pick (TM, mode) such that TM | M (no partial tiles) and the bias layout
    lines up with the flattened B*N rows.

      mode "multiple": TM % N == 0 -> bias pre-tiled to (TM, D), whole-block read.
      mode "divisor" : N % TM == 0 -> full (N, D) bias VMEM-resident, in-kernel slice.

    Preference tiers:
      1) TM <= target_rows AND grid steps >= min_steps (pipelining + both v7x TCs),
         largest such TM;
      2) TM <= target_rows, largest such TM;
      3) smallest candidate (only for pathological shapes).
    """
    B = M // N
    cands = set()
    for d in _divisors(N):
        if d % 8 == 0:
            cands.add((d, "divisor"))
    for r in _divisors(B):
        tm = r * N
        if tm % 8 == 0 or tm == M:
            cands.add((tm, "multiple"))
    cands.add((M, "multiple"))  # always-valid fallback (grid = 1)

    def steps(tm):
        return M // tm  # exact: every candidate divides M

    both = [c for c in cands if c[0] <= target_rows and steps(c[0]) >= min_steps]
    if both:
        return max(both, key=lambda c: c[0])
    fits = [c for c in cands if c[0] <= target_rows]
    if fits:
        return max(fits, key=lambda c: c[0])
    return min(cands, key=lambda c: c[0])


def patch_embed_pallas(patches, w_mat, bias, n_patches, *, target_rows=1024,
                       min_steps=4, out_dtype=jnp.float32):
    """patches: (M=B*N, K) f32, w_mat: (K, D) bf16, bias: (N, D) f32 -> (M, D)."""
    M, K = patches.shape
    D = w_mat.shape[1]
    TM, mode = _plan_tiles(M, n_patches, target_rows, min_steps)

    if mode == "multiple":
        reps = TM // n_patches
        # jnp.tile of a closed-over constant is folded by XLA under jit (one-time cost).
        bias_arr = jnp.tile(bias, (reps, 1)) if reps > 1 else bias   # (TM, D)
        sliced = False
        n_bias_rows = TM
    else:  # "divisor": N % TM == 0, tile boundaries align with batch boundaries
        bias_arr = bias                                              # (N, D), resident
        sliced = True
        n_bias_rows = n_patches

    grid = (M // TM,)  # TM | M by construction -> no partial / OOB tiles
    kernel = _make_patch_embed_kernel(TM, n_bias_rows, sliced)

    bytes_accessed = (M * K * patches.dtype.itemsize
                      + K * D * w_mat.dtype.itemsize
                      + bias_arr.size * bias_arr.dtype.itemsize
                      + M * D * jnp.dtype(out_dtype).itemsize)

    return pl.pallas_call(
        kernel,
        out_shape=jax.ShapeDtypeStruct((M, D), out_dtype),
        grid=grid,
        in_specs=[
            pl.BlockSpec((TM, K), lambda i: (i, 0)),          # patch rows, streamed
            pl.BlockSpec((K, D), lambda i: (0, 0)),           # weight, VMEM-resident
            pl.BlockSpec(bias_arr.shape, lambda i: (0, 0)),   # bias, VMEM-resident
        ],
        out_specs=pl.BlockSpec((TM, D), lambda i: (i, 0)),
        compiler_params=pltpu.CompilerParams(
            dimension_semantics=("parallel",),                # shard M-tiles across TCs
            vmem_limit_bytes=_vmem_limit_bytes(),
        ),
        cost_estimate=pl.CostEstimate(
            flops=2 * M * K * D, transcendentals=0, bytes_accessed=bytes_accessed),
    )(patches, w_mat, bias_arr)


# ----------------------------------------------------------------------------
# Parameter / buffer setup (precomputed once)
# ----------------------------------------------------------------------------
def positional_embedding(d_model, n):
    # matches PositionalEmbedding buffer pe[:, :n]
    position = jnp.arange(n, dtype=jnp.float32)[:, None]                     # (n, 1)
    div_term = jnp.exp(jnp.arange(0, d_model, 2, dtype=jnp.float32)
                       * -(math.log(10000.0) / d_model))
    ang = position * div_term
    pe = jnp.zeros((n, d_model), jnp.float32)
    pe = pe.at[:, 0::2].set(jnp.sin(ang))
    pe = pe.at[:, 1::2].set(jnp.cos(ang)[:, : d_model // 2])
    return pe


def init_list_patch_embedding(key, enc_in, d_model, patch_len_list, stride_list, seq_len):
    """Per-branch params: reordered bf16 weight, bias = pe[:N] + learnable_embedding."""
    branches = []
    for patch_len, stride in zip(patch_len_list, stride_list):
        key, k_w, k_c = jax.random.split(key, 3)
        # Conv2d weight (d_model, 1, C, P); kaiming_normal_ fan_in / leaky_relu gain
        fan_in = enc_in * patch_len
        gain = math.sqrt(2.0 / (1.0 + 0.01 ** 2))
        std = gain / math.sqrt(fan_in)
        w = jax.random.normal(k_w, (d_model, enc_in, patch_len), jnp.float32) * std
        cxt = jax.random.normal(k_c, (1, d_model), jnp.float32)  # learnable_embeddings[i]

        n_patches = (seq_len + stride - patch_len) // patch_len + 1
        # Matmul form matching patches[b, n, p*C + c] = x_pad[b, n*P + p, c]:
        #   w_mat[p*C + c, d] = W[d, c, p]
        w_mat = jnp.transpose(w, (2, 1, 0)).reshape(patch_len * enc_in, d_model)
        w_mat = w_mat.astype(jnp.bfloat16)                        # f32 MXU accumulation
        bias = positional_embedding(d_model, n_patches) + cxt     # (N, D) f32
        branches.append(dict(patch_len=patch_len, stride=stride, n_patches=n_patches,
                             d_model=d_model, w_mat=w_mat, bias=bias))
    return branches


# ----------------------------------------------------------------------------
# Forward pass (ListPatchEmbedding.forward, single_channel=False)
# ----------------------------------------------------------------------------
def list_patch_embedding_forward(x, branches, *, target_rows=1024, min_steps=4,
                                 out_dtype=jnp.float32):
    """x: (B, L, enc_in) f32  ->  list of (B, N_i, d_model)."""
    B, L, C = x.shape
    outputs = []
    for br in branches:
        P, N, D = br["patch_len"], br["n_patches"], br["d_model"]
        # ReplicationPad1d((0, stride)) along time, trimmed to the N*P samples the
        # stride-P conv actually reads.  In (B, L, C) layout the im2col is then a
        # free reshape — no transpose or bf16 pre-pass through HBM.
        pad_cols = N * P - L
        if pad_cols > 0:
            x_pad = jnp.pad(x, ((0, 0), (0, pad_cols), (0, 0)), mode="edge")
        else:
            x_pad = x[:, :N * P, :]
        patches = x_pad.reshape(B * N, P * C)                     # (M, K), K ordered (p, c)
        out = patch_embed_pallas(patches, br["w_mat"], br["bias"], N,
                                 target_rows=target_rows, min_steps=min_steps,
                                 out_dtype=out_dtype)             # (M, D)
        outputs.append(out.reshape(B, N, D))
        # TODO(synk): augmentation list is ['none'] (identity) and self.dropout is
        # never applied inside forward(); single_channel=True path not implemented.
    return outputs


if __name__ == "__main__":
    key = jax.random.PRNGKey(0)
    B, L, enc_in, d_model = 2, 16, 4, 32
    patch_len_list = [4, 8]
    stride_list = [4, 8]

    k_x, k_p, k_x2, k_p2 = jax.random.split(key, 4)
    x = jax.random.normal(k_x, (B, L, enc_in), jnp.float32)       # module input (B, L, C)
    branches = init_list_patch_embedding(k_p, enc_in, d_model,
                                         patch_len_list, stride_list, L)

    fwd = jax.jit(lambda inp: list_patch_embedding_forward(inp, branches))
    outs = fwd(x)
    for o in outs:
        jax.block_until_ready(o)

    # shape / dtype sanity
    expected_N = [((L + s - p) // p) + 1 for p, s in zip(patch_len_list, stride_list)]
    assert [tuple(o.shape) for o in outs] == [(B, n, d_model) for n in expected_N]
    assert all(o.dtype == jnp.float32 for o in outs)

    # numeric sanity vs a plain JAX reference (operands bf16-cast like the kernel;
    # bf16 cast means a few-ULP difference vs the f32 PyTorch conv — documented).
    def reference(xx, br):
        P, N, D = br["patch_len"], br["n_patches"], br["d_model"]
        Bb, Ll, Cc = xx.shape
        pad_cols = N * P - Ll
        xp = (jnp.pad(xx, ((0, 0), (0, pad_cols), (0, 0)), mode="edge")
              if pad_cols > 0 else xx[:, :N * P, :])
        patches = xp.reshape(Bb, N, P * Cc).astype(jnp.bfloat16).astype(jnp.float32)
        w = br["w_mat"].astype(jnp.float32)
        return jnp.einsum("bnk,kd->bnd", patches, w,
                          preferred_element_type=jnp.float32) + br["bias"][None]

    for o, br in zip(outs, branches):
        ref = reference(x, br)
        assert jnp.allclose(o, ref, atol=1e-2, rtol=1e-2), float(jnp.max(jnp.abs(o - ref)))

    # Second config exercising the VMEM-resident-bias "divisor" tiling and a
    # multi-step parallel grid: B=2, L=120, P=8 -> N=16, M=32, TM=8, grid=(4,).
    B2, L2 = 2, 120
    x2 = jax.random.normal(k_x2, (B2, L2, enc_in), jnp.float32)
    branches2 = init_list_patch_embedding(k_p2, enc_in, d_model, [8], [8], L2)
    outs2 = jax.jit(lambda inp: list_patch_embedding_forward(inp, branches2))(x2)
    for o in outs2:
        jax.block_until_ready(o)
    for o, br in zip(outs2, branches2):
        ref = reference(x2, br)
        assert o.shape == ref.shape
        assert jnp.allclose(o, ref, atol=1e-2, rtol=1e-2), float(jnp.max(jnp.abs(o - ref)))

    print("KERNEL_OK")
</pallas_src>

<mosaic_0001>
module attributes {stable_mosaic.version = 11 : i64} {
  func.func @kernel(%arg0: i32, %arg1: memref<6x32xf32, #tpu.memory_space<vmem>>, %arg2: memref<32x32xbf16, #tpu.memory_space<vmem>>, %arg3: memref<6x32xf32, #tpu.memory_space<vmem>>, %arg4: memref<6x32xf32, #tpu.memory_space<vmem>>) attributes {dimension_semantics = [#tpu.dimension_semantics<parallel>], iteration_bounds = array<i64: 1>, scalar_prefetch = 0 : i64, scratch_operands = 0 : i64, tpu.core_type = #tpu.core_type<tc>, window_params = [{transform_indices = @transform_0, window_bounds = array<i64: 6, 32>}, {pipeline_mode = #tpu.pipeline_mode<synchronous>, transform_indices = @transform_1, window_bounds = array<i64: 32, 32>}, {pipeline_mode = #tpu.pipeline_mode<synchronous>, transform_indices = @transform_2, window_bounds = array<i64: 6, 32>}, {transform_indices = @transform_3, window_bounds = array<i64: 6, 32>}]} {
    %c0 = arith.constant 0 : index
    %c0_0 = arith.constant 0 : index
    %0 = vector.load %arg3[%c0, %c0_0] : memref<6x32xf32, #tpu.memory_space<vmem>>, vector<6x32xf32>
    %c0_1 = arith.constant 0 : index
    %c0_2 = arith.constant 0 : index
    %1 = vector.load %arg1[%c0_1, %c0_2] : memref<6x32xf32, #tpu.memory_space<vmem>>, vector<6x32xf32>
    %2 = arith.truncf %1 : vector<6x32xf32> to vector<6x32xbf16>
    %c0_3 = arith.constant 0 : index
    %c0_4 = arith.constant 0 : index
    %3 = vector.load %arg2[%c0_3, %c0_4] : memref<32x32xbf16, #tpu.memory_space<vmem>>, vector<32x32xbf16>
    %cst = arith.constant dense<0.000000e+00> : vector<6x32xf32>
    %4 = tpu.matmul %2, %3, %cst {dimension_numbers = #tpu.dot_dimension_numbers<[1], [0], [0], [1], [0, 0, 1, 1], [], []>} : vector<6x32xbf16>, vector<32x32xbf16>, vector<6x32xf32> -> vector<6x32xf32>
    %5 = arith.addf %4, %0 : vector<6x32xf32>
    %c0_5 = arith.constant 0 : index
    %c0_6 = arith.constant 0 : index
    %6 = vector.load %arg4[%c0_5, %c0_6] : memref<6x32xf32, #tpu.memory_space<vmem>>, vector<6x32xf32>
    tpu.vector_store %arg4[%c0_5, %c0_6], %5 {strides = array<i32>} : memref<6x32xf32, #tpu.memory_space<vmem>>, vector<6x32xf32>,
    return
  }
  func.func @transform_0(%arg0: i32) -> (i32, i32) {
    %c0_i32 = arith.constant 0 : i32
    %c0_i32_0 = arith.constant 0 : i32
    return %arg0, %c0_i32 : i32, i32
  }
  func.func @transform_1(%arg0: i32) -> (i32, i32) {
    %c0_i32 = arith.constant 0 : i32
    %c0_i32_0 = arith.constant 0 : i32
    %c0_i32_1 = arith.constant 0 : i32
    return %c0_i32, %c0_i32_0 : i32, i32
  }
  func.func @transform_2(%arg0: i32) -> (i32, i32) {
    %c0_i32 = arith.constant 0 : i32
    %c0_i32_0 = arith.constant 0 : i32
    %c0_i32_1 = arith.constant 0 : i32
    return %c0_i32, %c0_i32_0 : i32, i32
  }
  func.func @transform_3(%arg0: i32) -> (i32, i32) {
    %c0_i32 = arith.constant 0 : i32
    %c0_i32_0 = arith.constant 0 : i32
    return %arg0, %c0_i32 : i32, i32
  }
}

module attributes {stable_mosaic.version = 11 : i64} {
  func.func @kernel(%arg0: i32, %arg1: memref<10x16xf32, #tpu.memory_space<vmem>>, %arg2: memref<16x32xbf16, #tpu.memory_space<vmem>>, %arg3: memref<10x32xf32, #tpu.memory_space<vmem>>, %arg4: memref<10x32xf32, #tpu.memory_space<vmem>>) attributes {dimension_semantics = [#tpu.dimension_semantics<parallel>], iteration_bounds = array<i64: 1>, scalar_prefetch = 0 : i64, scratch_operands = 0 : i64, tpu.core_type = #tpu.core_type<tc>, window_params = [{transform_indices = @transform_0, window_bounds = array<i64: 10, 16>}, {pipeline_mode = #tpu.pipeline_mode<synchronous>, transform_indices = @transform_1, window_bounds = array<i64: 16, 32>}, {pipeline_mode = #tpu.pipeline_mode<synchronous>, transform_indices = @transform_2, window_bounds = array<i64: 10, 32>}, {transform_indices = @transform_3, window_bounds = array<i64: 10, 32>}]} {
    %c0 = arith.constant 0 : index
    %c0_0 = arith.constant 0 : index
    %0 = vector.load %arg3[%c0, %c0_0] : memref<10x32xf32, #tpu.memory_space<vmem>>, vector<10x32xf32>
    %c0_1 = arith.constant 0 : index
    %c0_2 = arith.constant 0 : index
    %1 = vector.load %arg1[%c0_1, %c0_2] : memref<10x16xf32, #tpu.memory_space<vmem>>, vector<10x16xf32>
    %2 = arith.truncf %1 : vector<10x16xf32> to vector<10x16xbf16>
    %c0_3 = arith.constant 0 : index
    %c0_4 = arith.constant 0 : index
    %3 = vector.load %arg2[%c0_3, %c0_4] : memref<16x32xbf16, #tpu.memory_space<vmem>>, vector<16x32xbf16>
    %cst = arith.constant dense<0.000000e+00> : vector<10x32xf32>
    %4 = tpu.matmul %2, %3, %cst {dimension_numbers = #tpu.dot_dimension_numbers<[1], [0], [0], [1], [0, 0, 1, 1], [], []>} : vector<10x16xbf16>, vector<16x32xbf16>, vector<10x32xf32> -> vector<10x32xf32>
    %5 = arith.addf %4, %0 : vector<10x32xf32>
    %c0_5 = arith.constant 0 : index
    %c0_6 = arith.constant 0 : index
    %6 = vector.load %arg4[%c0_5, %c0_6] : memref<10x32xf32, #tpu.memory_space<vmem>>, vector<10x32xf32>
    tpu.vector_store %arg4[%c0_5, %c0_6], %5 {strides = array<i32>} : memref<10x32xf32, #tpu.memory_space<vmem>>, vector<10x32xf32>,
    return
  }
  func.func @transform_0(%arg0: i32) -> (i32, i32) {
    %c0_i32 = arith.constant 0 : i32
    %c0_i32_0 = arith.constant 0 : i32
    return %arg0, %c0_i32 : i32, i32
  }
  func.func @transform_1(%arg0: i32) -> (i32, i32) {
    %c0_i32 = arith.constant 0 : i32
    %c0_i32_0 = arith.constant 0 : i32
    %c0_i32_1 = arith.constant 0 : i32
    return %c0_i32, %c0_i32_0 : i32, i32
  }
  func.func @transform_2(%arg0: i32) -> (i32, i32) {
    %c0_i32 = arith.constant 0 : i32
    %c0_i32_0 = arith.constant 0 : i32
    %c0_i32_1 = arith.constant 0 : i32
    return %c0_i32, %c0_i32_0 : i32, i32
  }
  func.func @transform_3(%arg0: i32) -> (i32, i32) {
    %c0_i32 = arith.constant 0 : i32
    %c0_i32_0 = arith.constant 0 : i32
    return %arg0, %c0_i32 : i32, i32
  }
}

</mosaic_0001>

<llo_original>
// kernel: tile.11
$region0: #{tile.11}
  %s0 = inlined_call_operand.vmem [shape: f32[2,5,32], index: 0, kind: input, shape index: {}]
  %s1 = inlined_call_operand.vmem [shape: f32[10,32], index: 1, kind: output, shape index: {}]
  %v2 = vld [vmem:[%s0] sm:$0x1f]
  %vm3 = vcmask 261120
  %4 = vst.msk [vmem:[%s1] sm:$0x1f] %vm3, %v2
  %s5 = scalar_lea.vmem %s0, 8
  %v6 = vld [vmem:[%s5] sm:$0x1f]
  %vm7 = vcmask 261120
  %s8 = scalar_lea.vmem %s1, 5
  %9 = vst.msk [vmem:[%s8] sm:$0x1f] %vm7, %v6

// kernel: tile.15
$region0: #{tile.15}
  %s0 = inlined_call_operand.vmem [shape: f32[2,3,32], index: 0, kind: input, shape index: {}]
  %s1 = inlined_call_operand.vmem [shape: f32[6,32], index: 1, kind: output, shape index: {}]
  $region1: #{tile.15} parent=0
    #allocation0 [shape = 'u8[8192]{0}', space=vmem, size = 0x2000, scoped, tag = 'scoped mem for input reshape']
    %s3 = ssub.s32 16, 1
    %s4 = scalar_lea.vmem %s0, 4
    %v5 = vld [vmem:[%s4] sm:%s3]
    %s6 = scalar_lea.vmem [#allocation0], 8
    %7 = vst [vmem:[%s6] sm:%s3] %v5
    %v8 = vld [vmem:[%s0] sm:%s3]
    %9 = vst [vmem:[#allocation0] sm:%s3] %v8
    %v10 = vld [vmem:[#allocation0] sm:$0x7]
    %vm11 = vcmask 261120
    %12 = vst.msk [vmem:[%s1] sm:$0x7] %vm11, %v10
    %s13 = scalar_lea.vmem [#allocation0], 8
    %v14 = vld [vmem:[%s13] sm:$0x7]
    %vm15 = vcmask 261120
    %s16 = scalar_lea.vmem %s1, 3
    %17 = vst.msk [vmem:[%s16] sm:$0x7] %vm15, %v14

// kernel: _lambda_.2
$region0: #{_lambda_.2}
  #allocation0 [shape = 'u32[]', space=smem, size = 0x4, offset = 0x4, fixed_abs, tag = 'smem constant byte address 0x4 - core index']
  #allocation1 [shape = 'u32[72,128]{1,0:T(1,128)}', space=vmem, size = 0x9000, scoped, tag = 'internal scratch']
  %s0 = inlined_call_operand.vmem [shape: f32[10,16], index: 0, kind: input, shape index: {}]
  %s1 = inlined_call_operand.vmem [shape: bf16[16,32], index: 1, kind: input, shape index: {}]
  %s2 = inlined_call_operand.vmem [shape: f32[10,32], index: 2, kind: input, shape index: {}]
  %s3 = inlined_call_operand.vmem [shape: f32[10,32], index: 3, kind: output, shape index: {}]
  %s4 = sld [smem:[#allocation0]]
  $region22: #{_lambda_.2} parent=0
    _
  %s6 = ssub.s32 1, %s4
  %s7 = scalar_select 0, %s6, %s4
  // Predicated region
  $region2: #{_lambda_.2} parent=0 // pred_check
    _
  $region3: #{_lambda_.2} parent=0 // pred_check_branch
    %9 = sbr.rel (0) target = $region5
  $region4: #{_lambda_.2} parent=0 // pred_region
    _
  $region5: #{_lambda_.2} parent=0 // pred_fallthru
    _
  // Predicated region
  $region6: #{_lambda_.2} parent=0 // pred_check
    _
  $region7: #{_lambda_.2} parent=0 // pred_check_branch
    %11 = sbr.rel (0) target = $region9
  $region8: #{_lambda_.2} parent=0 // pred_region
    _
  $region9: #{_lambda_.2} parent=0 // pred_fallthru
    _
  // Predicated region
  $region10: #{_lambda_.2} parent=0 // pred_check
    _
  $region11: #{_lambda_.2} parent=0 // pred_check_branch
    %13 = sbr.rel (0) target = $region13
  $region12: #{_lambda_.2} parent=0 // pred_region
    _
  $region13: #{_lambda_.2} parent=0 // pred_fallthru
    _
  %v15 = vld [vmem:[%s2] sm:$0xff]
  %v16 = vld [vmem:[%s2 + $0x8] sm:$0x3]
  %v17 = vld [vmem:[%s0] sm:$0xff]
  %v18 = vld [vmem:[%s0 + $0x8] sm:$0x3]
  %v19 = vpack.c.bf16 %v18, %v17
  %v20 = vld [vmem:[%s1] sm:$0xf]
  %v21 = vld [vmem:[%s1 + $0x4] sm:$0xf]
  %v24 = vunpack.c.l.b16 %v20
  %v25 = vunpack.c.l.b16 %v21
  %v26 = vpack.c.b16 %v25, %v24
  %vm28 = vcmask 130048
  %v30 = vsel %vm28, %v19, 0
  %32 = vmatpush.bf16.msra.mxu0 0
  %33 = vmatpush.bf16.msra.mxu0 0
  %34 = vmatpush.bf16.msra.mxu0 0
  %35 = vmatpush.bf16.msra.mxu0 0
  %36 = vmatpush.bf16.msra.mxu0 0
  %37 = vmatpush.bf16.msra.mxu0 0
  %38 = vmatpush.bf16.msra.mxu0 0
  %39 = vmatpush.bf16.msra.mxu0 %v26
  %40 = vmatmul.bf16.gmra.mxu0 %v30
  %v41 = vpop.f32.mrf.mxu0
  %v42 = vadd.f32 %v15, %v41
  %v43 = vpop.f32.mrf.mxu0
  %v44 = vadd.f32 %v16, %v43
  %45 = vdwg.mxu0
  %vm46 = vcmask 261120
  %47 = vst.msk [vmem:[%s3] sm:$0xff] %vm46, %v42
  %vm48 = vcmask 254976
  %49 = vst.msk [vmem:[%s3 + $0x8] sm:$0x3] %vm48, %v44
  // Predicated region
  $region14: #{_lambda_.2} parent=0 // pred_check
    _
  $region15: #{_lambda_.2} parent=0 // pred_check_branch
    %51 = sbr.rel (0) target = $region17
  $region16: #{_lambda_.2} parent=0 // pred_region
    _
  $region17: #{_lambda_.2} parent=0 // pred_fallthru
    _
  // Predicated region
  $region18: #{_lambda_.2} parent=0 // pred_check
    _
  $region19: #{_lambda_.2} parent=0 // pred_check_branch
    %53 = sbr.rel (0) target = $region21
  $region20: #{_lambda_.2} parent=0 // pred_region
    _
  $region21: #{_lambda_.2} parent=0 // pred_fallthru
    _

// kernel: _lambda_.3
$region0: #{_lambda_.3}
  #allocation0 [shape = 'u32[]', space=smem, size = 0x4, offset = 0x4, fixed_abs, tag = 'smem constant byte address 0x4 - core index']
  #allocation1 [shape = 'u32[72,128]{1,0:T(1,128)}', space=vmem, size = 0x9000, scoped, tag = 'internal scratch']
  %s0 = inlined_call_operand.vmem [shape: f32[6,32], index: 0, kind: input, shape index: {}]
  %s1 = inlined_call_operand.vmem [shape: bf16[32,32], index: 1, kind: input, shape index: {}]
  %s2 = inlined_call_operand.vmem [shape: f32[6,32], index: 2, kind: input, shape index: {}]
  %s3 = inlined_call_operand.vmem [shape: f32[6,32], index: 3, kind: output, shape index: {}]
  %s4 = sld [smem:[#allocation0]]
  $region22: #{_lambda_.3} parent=0
    _
  %s6 = ssub.s32 1, %s4
  %s7 = scalar_select 0, %s6, %s4
  // Predicated region
  $region2: #{_lambda_.3} parent=0 // pred_check
    _
  $region3: #{_lambda_.3} parent=0 // pred_check_branch
    %9 = sbr.rel (0) target = $region5
  $region4: #{_lambda_.3} parent=0 // pred_region
    _
  $region5: #{_lambda_.3} parent=0 // pred_fallthru
    _
  // Predicated region
  $region6: #{_lambda_.3} parent=0 // pred_check
    _
  $region7: #{_lambda_.3} parent=0 // pred_check_branch
    %11 = sbr.rel (0) target = $region9
  $region8: #{_lambda_.3} parent=0 // pred_region
    _
  $region9: #{_lambda_.3} parent=0 // pred_fallthru
    _
  // Predicated region
  $region10: #{_lambda_.3} parent=0 // pred_check
    _
  $region11: #{_lambda_.3} parent=0 // pred_check_branch
    %13 = sbr.rel (0) target = $region13
  $region12: #{_lambda_.3} parent=0 // pred_region
    _
  $region13: #{_lambda_.3} parent=0 // pred_fallthru
    _
  %v15 = vld [vmem:[%s2] sm:$0x3f]
  %v16 = vld [vmem:[%s0] sm:$0x3f]
  %v17 = vpack.c.bf16 %v16, %v16
  %v18 = vld [vmem:[%s1] sm:$0xf]
  %v19 = vld [vmem:[%s1 + $0x4] sm:$0xf]
  %v20 = vld [vmem:[%s1 + $0x8] sm:$0xf]
  %v21 = vld [vmem:[%s1 + $0xc] sm:$0xf]
  %v26 = vunpack.c.l.b16 %v18
  %v27 = vunpack.c.l.b16 %v19
  %v28 = vunpack.c.l.b16 %v20
  %v29 = vunpack.c.l.b16 %v21
  %v30 = vpack.c.b16 %v27, %v26
  %v31 = vpack.c.b16 %v29, %v28
  %vm34 = vcmask 261120
  %v36 = vsel %vm34, %v17, 0
  %38 = vmatpush.bf16.msra.mxu0 0
  %39 = vmatpush.bf16.msra.mxu0 0
  %40 = vmatpush.bf16.msra.mxu0 0
  %41 = vmatpush.bf16.msra.mxu0 0
  %42 = vmatpush.bf16.msra.mxu0 0
  %43 = vmatpush.bf16.msra.mxu0 0
  %44 = vmatpush.bf16.msra.mxu0 %v31
  %45 = vmatpush.bf16.msra.mxu0 %v30
  %46 = vmatmul.bf16.gmra.mxu0 %v36
  %v47 = vpop.f32.mrf.mxu0
  %v48 = vadd.f32 %v15, %v47
  %v49 = vpop.f32.mrf.mxu0
  %50 = vdwg.mxu0
  %vm51 = vcmask 259072
  %52 = vst.msk [vmem:[%s3] sm:$0x3f] %vm51, %v48
  // Predicated region
  $region14: #{_lambda_.3} parent=0 // pred_check
    _
  $region15: #{_lambda_.3} parent=0 // pred_check_branch
    %54 = sbr.rel (0) target = $region17
  $region16: #{_lambda_.3} parent=0 // pred_region
    _
  $region17: #{_lambda_.3} parent=0 // pred_fallthru
    _
  // Predicated region
  $region18: #{_lambda_.3} parent=0 // pred_check
    _
  $region19: #{_lambda_.3} parent=0 // pred_check_branch
    %56 = sbr.rel (0) target = $region21
  $region20: #{_lambda_.3} parent=0 // pred_region
    _
  $region21: #{_lambda_.3} parent=0 // pred_fallthru
    _

</llo_original>
